<compile_context>
chip_gen: v7x
topology: tpu7x:2x2x1
jax: 0.10.0
libtpu: 0.0.40
codegen_flags: <defaults>
</compile_context>

<pallas_src>
import jax
import jax.numpy as jnp
from jax import lax
from jax.experimental import pallas as pl
from jax.experimental.pallas import tpu as pltpu


def word_attention_kernel(bounds_ref, x_ref, u_ref, out_ref):
    TB, S, Ep = x_ref.shape

    u = u_ref[...]                                           # (1, 1, Ep) = v @ W

    # ---- Pass 1: per-position scores <x[b, s, :], u> (lane reduction). ----
    scores = jnp.sum(x_ref[...] * u, axis=2, keepdims=True)  # (TB, S, 1) f32

    # Per-bag validity mask from the [start, end) bounds.
    start = bounds_ref[:, :, 0:1]                            # (TB, 1, 1) int32
    end = bounds_ref[:, :, 1:2]                              # (TB, 1, 1) int32
    pos = lax.broadcasted_iota(jnp.int32, (TB, S, 1), 1)     # (TB, S, 1)
    valid = (pos >= start) & (pos < end)                     # (TB, S, 1)

    # Masked softmax numerator over the valid positions of each bag.
    neg = jnp.float32(-1e30)
    masked = jnp.where(valid, scores, neg)
    m = jnp.max(masked, axis=1, keepdims=True)               # (TB, 1, 1)
    e = jnp.where(valid, jnp.exp(masked - m), 0.0)           # (TB, S, 1)

    # Denominator with empty-bag guard; normalization folded AFTER the
    # S-reduction (no (TB,S,1) divide, no materialized p).  EUP reciprocal +
    # one Newton step -> f32 accuracy at negligible (per-bag) cost.
    denom = jnp.maximum(jnp.sum(e, axis=1), jnp.float32(1e-30))   # (TB, 1)
    inv = pl.reciprocal(denom, approx=True)
    inv = inv * (2.0 - denom * inv)

    # ---- Pass 2: weighted bag sum (re-read x_ref; sublane reduce). ----
    sent = jnp.sum(e * x_ref[...], axis=1) * inv             # (TB, Ep), lane dense
    out_ref[...] = sent.astype(out_ref.dtype)


def _choose_bags_per_block(B, bag_bytes):
    """Bags per grid step: ~2 MiB of x per step, multiple of 8, >=2 steps if possible."""
    if B <= 8:
        return B                      # single full-extent block
    tb = ((2 << 20) // max(bag_bytes, 1)) // 8 * 8
    tb = int(max(8, min(tb, 1024)))
    # Keep at least two grid steps so v7x's two TensorCores both get work.
    half = max(8, ((B + 1) // 2 + 7) // 8 * 8)
    return min(tb, half)


def word_attention(x, w, v, word_index, *, bags_per_block=None):
    """x: (B, S, E) f32; w: (E, E) nn.Linear weight (out, in); v: (1, E);
    word_index: host-side list of (start, end) per batch element."""
    B, S, E = x.shape
    x = x.astype(jnp.float32)

    # Fold relationVector into relationMatrix: (x @ W^T) @ v^T == x @ (v @ W)^T.
    u = jnp.dot(v.astype(jnp.float32), w.astype(jnp.float32))       # (1, E)

    # Pad the embedding (lane) axis to a multiple of 128 for fully occupied
    # vregs / dense DMA.  Zero lanes are inert for the dot-with-u and the sum.
    Ep = ((E + 127) // 128) * 128
    if Ep != E:
        x_k = jnp.pad(x, ((0, 0), (0, 0), (0, Ep - E)))
        u_k = jnp.pad(u, ((0, 0), (0, Ep - E)))
    else:
        x_k, u_k = x, u
    u_k = u_k.reshape(1, 1, Ep)

    bounds = jnp.asarray(word_index, dtype=jnp.int32).reshape(B, 1, 2)

    bag_bytes = S * Ep * 4
    TB = bags_per_block if bags_per_block is not None else _choose_bags_per_block(B, bag_bytes)
    nblk = pl.cdiv(B, TB)
    Bp = nblk * TB
    if Bp != B:
        # Padded bags get start == end == 0 -> empty -> zero output rows.
        x_k = jnp.pad(x_k, ((0, Bp - B), (0, 0), (0, 0)))
        bounds = jnp.pad(bounds, ((0, Bp - B), (0, 0), (0, 0)))

    # VMEM budget: double-buffered x / out / bounds blocks (+ the tiny u).
    # The (TB, 1, 2) bounds block pads to one (8, 128) tile per bag in VMEM.
    x_blk = TB * S * Ep * 4
    out_blk = TB * Ep * 4
    bounds_blk = TB * 8 * 128 * 4
    need = 2 * (x_blk + out_blk + bounds_blk) + 2 * (8 * 128 * 4)
    vmem_limit = int(min(max(2 * need + (4 << 20), 16 << 20), 48 << 20))

    out_p = pl.pallas_call(
        word_attention_kernel,
        out_shape=jax.ShapeDtypeStruct((Bp, Ep), jnp.float32),
        grid=(nblk,),
        in_specs=[
            pl.BlockSpec((TB, 1, 2), lambda i: (i, 0, 0)),    # per-bag [start, end)
            pl.BlockSpec((TB, S, Ep), lambda i: (i, 0, 0)),   # word embeddings
            pl.BlockSpec((1, 1, Ep), lambda i: (0, 0, 0)),    # u = v @ W
        ],
        out_specs=pl.BlockSpec((TB, Ep), lambda i: (i, 0)),   # sentence vectors
        compiler_params=pltpu.CompilerParams(
            dimension_semantics=("parallel",),
            vmem_limit_bytes=vmem_limit,
        ),
    )(bounds, x_k, u_k)

    out = out_p[:B, :E]                                       # (B, E)

    # The PyTorch module returns `keep_attention` for the LAST bag only
    # (shape (L, 1)).  word_index is a host-side list, so compute that single
    # tiny softmax in plain JAX instead of emitting a lane-width-1 tensor from
    # the kernel for every bag.
    s_last, e_last = word_index[-1]
    bag = x[B - 1, s_last:e_last, :]                          # (L, E)
    keep_attention = jax.nn.softmax(bag @ u[0])[:, None]      # (L, 1)
    return out, keep_attention


def reference(x, w, v, word_index):
    """Pure-JAX replica of the PyTorch forward for verification."""
    outs = []
    keep = None
    for i, (s, e) in enumerate(word_index):
        bag = x[i, s:e]                                       # (L, E)
        scores = (bag @ w.T) @ v.T                            # (L, 1)
        p = jax.nn.softmax(scores.reshape(-1)).reshape(-1, 1)
        outs.append(jnp.sum(p * bag, axis=0))
        keep = p
    return jnp.stack(outs), keep


if __name__ == "__main__":
    B, S, E = 2, 8, 32
    key = jax.random.PRNGKey(0)
    kx, kw, kv = jax.random.split(key, 3)

    x = jax.random.normal(kx, (B, S, E), dtype=jnp.float32)
    w = jax.random.normal(kw, (E, E), dtype=jnp.float32) * 0.1   # relationMatrix.weight
    v = jax.random.normal(kv, (1, E), dtype=jnp.float32) * 0.1   # relationVector.weight
    word_index = [(1, 6), (2, 8)]                                # (start, end) per batch item

    out, keep_attn = word_attention(x, w, v, word_index)
    jax.block_until_ready((out, keep_attn))

    out_ref, keep_ref = reference(x, w, v, word_index)
    assert out.shape == (B, E)
    assert keep_attn.shape == keep_ref.shape
    # Tolerances cover the f32 rounding difference of the u = v @ W fold.
    assert jnp.allclose(out, out_ref, rtol=1e-3, atol=1e-5), float(jnp.max(jnp.abs(out - out_ref)))
    assert jnp.allclose(keep_attn, keep_ref, rtol=1e-3, atol=1e-6)

    print("KERNEL_OK")
</pallas_src>

<mosaic_0001>
module attributes {stable_mosaic.version = 11 : i64} {
  func.func @word_attention_kernel(%arg0: i32, %arg1: memref<2x1x2xi32, #tpu.memory_space<vmem>>, %arg2: memref<2x8x128xf32, #tpu.memory_space<vmem>>, %arg3: memref<1x1x128xf32, #tpu.memory_space<vmem>>, %arg4: memref<2x128xf32, #tpu.memory_space<vmem>>) attributes {dimension_semantics = [#tpu.dimension_semantics<parallel>], iteration_bounds = array<i64: 1>, scalar_prefetch = 0 : i64, scratch_operands = 0 : i64, tpu.core_type = #tpu.core_type<tc>, window_params = [{transform_indices = @transform_0, window_bounds = array<i64: 2, 1, 2>}, {transform_indices = @transform_1, window_bounds = array<i64: 2, 8, 128>}, {pipeline_mode = #tpu.pipeline_mode<synchronous>, transform_indices = @transform_2, window_bounds = array<i64: 1, 1, 128>}, {transform_indices = @transform_3, window_bounds = array<i64: 2, 128>}]} {
    %c0 = arith.constant 0 : index
    %c0_0 = arith.constant 0 : index
    %c0_1 = arith.constant 0 : index
    %0 = vector.load %arg3[%c0, %c0_0, %c0_1] : memref<1x1x128xf32, #tpu.memory_space<vmem>>, vector<1x1x128xf32>
    %c0_2 = arith.constant 0 : index
    %c0_3 = arith.constant 0 : index
    %c0_4 = arith.constant 0 : index
    %1 = vector.load %arg2[%c0_2, %c0_3, %c0_4] : memref<2x8x128xf32, #tpu.memory_space<vmem>>, vector<2x8x128xf32>
    %2 = vector.broadcast %0 : vector<1x1x128xf32> to vector<2x8x128xf32>
    %3 = arith.mulf %1, %2 : vector<2x8x128xf32>
    %cst = arith.constant dense<0.000000e+00> : vector<2x8xf32>
    %4 = vector.multi_reduction <add>, %3, %cst [2] : vector<2x8x128xf32> to vector<2x8xf32>
    %5 = vector.shape_cast %4 : vector<2x8xf32> to vector<2x8x1xf32>
    %c0_5 = arith.constant 0 : index
    %c0_6 = arith.constant 0 : index
    %c0_7 = arith.constant 0 : index
    %6 = vector.load %arg1[%c0_5, %c0_6, %c0_7] : memref<2x1x2xi32, #tpu.memory_space<vmem>>, vector<2x1x1xi32>
    %c0_8 = arith.constant 0 : index
    %c0_9 = arith.constant 0 : index
    %c1 = arith.constant 1 : index
    %7 = vector.load %arg1[%c0_8, %c0_9, %c1] : memref<2x1x2xi32, #tpu.memory_space<vmem>>, vector<2x1x1xi32>
    %8 = tpu.iota {dimensions = array<i32: 1>} : vector<2x8x1xi32>
    %9 = vector.broadcast %6 : vector<2x1x1xi32> to vector<2x8x1xi32>
    %10 = arith.cmpi sge, %8, %9 : vector<2x8x1xi32>
    %11 = vector.broadcast %7 : vector<2x1x1xi32> to vector<2x8x1xi32>
    %12 = arith.cmpi slt, %8, %11 : vector<2x8x1xi32>
    %13 = arith.andi %10, %12 : vector<2x8x1xi1>
    %cst_10 = arith.constant -1.000000e+30 : f32
    %14 = vector.broadcast %cst_10 : f32 to vector<2x8x1xf32>
    %15 = arith.select %13, %5, %14 : vector<2x8x1xi1>, vector<2x8x1xf32>
    %cst_11 = arith.constant dense<0xFF800000> : vector<2x1xf32>
    %16 = vector.multi_reduction <maximumf>, %15, %cst_11 [1] : vector<2x8x1xf32> to vector<2x1xf32>
    %17 = vector.shape_cast %16 : vector<2x1xf32> to vector<2x1x1xf32>
    %18 = vector.broadcast %17 : vector<2x1x1xf32> to vector<2x8x1xf32>
    %19 = arith.subf %15, %18 : vector<2x8x1xf32>
    %20 = math.exp %19 : vector<2x8x1xf32>
    %cst_12 = arith.constant 0.000000e+00 : f32
    %21 = vector.broadcast %cst_12 : f32 to vector<2x8x1xf32>
    %22 = arith.select %13, %20, %21 : vector<2x8x1xi1>, vector<2x8x1xf32>
    %cst_13 = arith.constant dense<0.000000e+00> : vector<2x1xf32>
    %23 = vector.multi_reduction <add>, %22, %cst_13 [1] : vector<2x8x1xf32> to vector<2x1xf32>
    %cst_14 = arith.constant 1.000000e-30 : f32
    %24 = vector.broadcast %cst_14 : f32 to vector<2x1xf32>
    %25 = arith.maximumf %23, %24 : vector<2x1xf32>
    %26 = tpu.reciprocal %25 {approx = true} : vector<2x1xf32> -> vector<2x1xf32>
    %27 = arith.mulf %25, %26 : vector<2x1xf32>
    %cst_15 = arith.constant 2.000000e+00 : f32
    %28 = vector.broadcast %cst_15 : f32 to vector<2x1xf32>
    %29 = arith.subf %28, %27 : vector<2x1xf32>
    %30 = arith.mulf %26, %29 : vector<2x1xf32>
    %c0_16 = arith.constant 0 : index
    %c0_17 = arith.constant 0 : index
    %c0_18 = arith.constant 0 : index
    %31 = vector.load %arg2[%c0_16, %c0_17, %c0_18] : memref<2x8x128xf32, #tpu.memory_space<vmem>>, vector<2x8x128xf32>
    %32 = vector.broadcast %22 : vector<2x8x1xf32> to vector<2x8x128xf32>
    %33 = arith.mulf %32, %31 : vector<2x8x128xf32>
    %cst_19 = arith.constant dense<0.000000e+00> : vector<2x128xf32>
    %34 = vector.multi_reduction <add>, %33, %cst_19 [1] : vector<2x8x128xf32> to vector<2x128xf32>
    %35 = vector.broadcast %30 : vector<2x1xf32> to vector<2x128xf32>
    %36 = arith.mulf %34, %35 : vector<2x128xf32>
    %c0_20 = arith.constant 0 : index
    %c0_21 = arith.constant 0 : index
    %37 = vector.load %arg4[%c0_20, %c0_21] : memref<2x128xf32, #tpu.memory_space<vmem>>, vector<2x128xf32>
    tpu.vector_store %arg4[%c0_20, %c0_21], %36 {strides = array<i32>} : memref<2x128xf32, #tpu.memory_space<vmem>>, vector<2x128xf32>,
    return
  }
  func.func @transform_0(%arg0: i32) -> (i32, i32, i32) {
    %c0_i32 = arith.constant 0 : i32
    %c0_i32_0 = arith.constant 0 : i32
    %c0_i32_1 = arith.constant 0 : i32
    return %arg0, %c0_i32, %c0_i32_0 : i32, i32, i32
  }
  func.func @transform_1(%arg0: i32) -> (i32, i32, i32) {
    %c0_i32 = arith.constant 0 : i32
    %c0_i32_0 = arith.constant 0 : i32
    %c0_i32_1 = arith.constant 0 : i32
    return %arg0, %c0_i32, %c0_i32_0 : i32, i32, i32
  }
  func.func @transform_2(%arg0: i32) -> (i32, i32, i32) {
    %c0_i32 = arith.constant 0 : i32
    %c0_i32_0 = arith.constant 0 : i32
    %c0_i32_1 = arith.constant 0 : i32
    %c0_i32_2 = arith.constant 0 : i32
    return %c0_i32, %c0_i32_0, %c0_i32_1 : i32, i32, i32
  }
  func.func @transform_3(%arg0: i32) -> (i32, i32) {
    %c0_i32 = arith.constant 0 : i32
    %c0_i32_0 = arith.constant 0 : i32
    return %arg0, %c0_i32 : i32, i32
  }
}

</mosaic_0001>

<llo_original>
// kernel: tpu_custom_call.1
$region0: #{tpu_custom_call.1}
  #allocation0 [shape = 'u32[]', space=smem, size = 0x4, offset = 0x4, fixed_abs, tag = 'smem constant byte address 0x4 - core index']
  #allocation1 [shape = 'u32[144,128]{1,0:T(1,128)}', space=vmem, size = 0x12000, scoped, tag = 'internal scratch']
  %s0 = inlined_call_operand.hbm [shape: s32[2,1,2], index: 0, kind: input, shape index: {}]
  %s1 = inlined_call_operand.hbm [shape: f32[2,8,128], index: 1, kind: input, shape index: {}]
  %s2 = inlined_call_operand.vmem [shape: f32[1,1,128], index: 2, kind: input, shape index: {}]
  %s3 = inlined_call_operand.hbm [shape: f32[2,128], index: 3, kind: output, shape index: {}]
  %s4 = sld [smem:[#allocation0]]
  $region30: #{tpu_custom_call.1} parent=0
    _
  %s6 = ssub.s32 1, %s4
  %s7 = scalar_select 0, %s6, %s4
  $region1: #{tpu_custom_call.1} parent=0
    #allocation2 [shape = 'u8[1024]{0}', space=vmem, size = 0x400, scoped, tag = 'input window, operand 0, single buffered']
    #allocation3 [shape = 's32[1]{0}', space=sflag, size = 0x4, scoped, tag = 'scoped memory for tpu_custom_call.1']
    #allocation4 [shape = 's32[1]{0}', space=sflag, size = 0x4, scoped, tag = 'scoped memory for tpu_custom_call.1']
    #allocation5 [shape = 'u8[8192]{0}', space=vmem, size = 0x2000, scoped, tag = 'input window, operand 1, single buffered']
    #allocation6 [shape = 's32[1]{0}', space=sflag, size = 0x4, scoped, tag = 'scoped memory for tpu_custom_call.1']
    #allocation7 [shape = 'u8[1024]{0}', space=vmem, size = 0x400, scoped, tag = 'output window, operand 0, single buffered']
    %8 = vsyncpa [#allocation3], 0
    %9 = vsyncpa [#allocation6], 0
    %10 = vsyncpa [#allocation4], 0
    // Predicated region
    $region2: #{tpu_custom_call.1} parent=1 // pred_check
      _
    $region3: #{tpu_custom_call.1} parent=1 // pred_check_branch
      %12 = sbr.rel (0) target = $region5
    $region4: #{tpu_custom_call.1} parent=1 // pred_region
      %s14 = ssub.s32 32, 32
      %15 = vsyncadd [#allocation3], %s14
      %s16 = sshll.u32 [#allocation2], 4
      %s17 = int_to_ptr.vmem [resolvable:$true] %s16
      %22 = dma.hbm_to_vmem [thread:$0]  %s0, 32, %s17, [#allocation3], 16, 16, 1
    $region5: #{tpu_custom_call.1} parent=1 // pred_fallthru
      _
    // Predicated region
    $region6: #{tpu_custom_call.1} parent=1 // pred_check
      _
    $region7: #{tpu_custom_call.1} parent=1 // pred_check_branch
      %24 = sbr.rel (0) target = $region9
    $region8: #{tpu_custom_call.1} parent=1 // pred_region
      %s26 = ssub.s32 256, 256
      %27 = vsyncadd [#allocation6], %s26
      %s28 = sshll.u32 [#allocation5], 4
      %s29 = int_to_ptr.vmem [resolvable:$true] %s28
      %34 = dma.hbm_to_vmem [thread:$0]  %s1, 256, %s29, [#allocation6], 128, 128, 8
    $region9: #{tpu_custom_call.1} parent=1 // pred_fallthru
      _
    // Predicated region
    $region10: #{tpu_custom_call.1} parent=1 // pred_check
      _
    $region11: #{tpu_custom_call.1} parent=1 // pred_check_branch
      %36 = sbr.rel (0) target = $region13
    $region12: #{tpu_custom_call.1} parent=1 // pred_region
      _
    $region13: #{tpu_custom_call.1} parent=1 // pred_fallthru
      _
    // Predicated region
    $region14: #{tpu_custom_call.1} parent=1 // pred_check
      _
    $region15: #{tpu_custom_call.1} parent=1 // pred_check_branch
      %38 = sbr.rel (0) target = $region17
    $region16: #{tpu_custom_call.1} parent=1 // pred_region
      %39 = dma.done [#allocation3], 32
    $region17: #{tpu_custom_call.1} parent=1 // pred_fallthru
      _
    // Predicated region
    $region18: #{tpu_custom_call.1} parent=1 // pred_check
      _
    $region19: #{tpu_custom_call.1} parent=1 // pred_check_branch
      %41 = sbr.rel (0) target = $region21
    $region20: #{tpu_custom_call.1} parent=1 // pred_region
      %42 = dma.done [#allocation6], 256
    $region21: #{tpu_custom_call.1} parent=1 // pred_fallthru
      _
    %v43 = vld [vmem:[%s2] sm:$0x1]
    %v44 = vld [vmem:[#allocation5] sm:$0xff]
    %v45 = vld [vmem:[#allocation5 + $0x8] sm:$0xff]
    %v47 = vlaneseq
    %v48 = vshrl.u32 %v47, 7
    %v49 = vsub.s32 0, %v48
    %v50 = vrot.slane %v43, %v49
    %v52 = vmul.f32 %v44, %v50
    %v53 = vmul.f32 %v45, %v50
    %54 = vadd.xlane.f32.xlu0 %v52
    %v55 = vpop.xlane.xlu0 %54
    %56 = vadd.xlane.f32.xlu0 %v53
    %v57 = vpop.xlane.xlu0 %56
    %v58 = vld [vmem:[#allocation2] sm:$0x1]
    %v59 = vld [vmem:[#allocation2 + $0x1] sm:$0x1]
    %v60 = vlaneseq
    %v61 = vshrl.u32 %v60, 7
    %v62 = vlaneseq
    %v63 = vshrl.u32 %v62, 7
    %v64 = vsub.s32 0, %v63
    %v65 = vrot.slane %v58, %v64
    %v66 = vlaneseq
    %v67 = vshrl.u32 %v66, 7
    %v68 = vsub.s32 0, %v67
    %v69 = vrot.slane %v59, %v68
    %vm70 = vcmp.ge.s32.totalorder %v61, %v65
    %vm71 = vcmp.ge.s32.totalorder %v61, %v69
    %vm72 = vcmp.lt.s32.totalorder %v61, %v65
    %vm73 = vcmp.lt.s32.totalorder %v61, %v69
    %v74 = vsel %vm72, 1, 0
    %v75 = vsel %vm73, 1, 0
    %76 = vrot.lane.b32.xlu0 %v74, 127
    %v77 = vpop.permute.xlu0 %76
    %78 = vrot.lane.b32.xlu0 %v75, 127
    %v79 = vpop.permute.xlu0 %78
    %vm80 = vcmp.ne.s32.totalorder %v77, 0
    %vm81 = vcmp.ne.s32.totalorder %v79, 0
    %vm82 = vmand %vm70, %vm80
    %vm83 = vmand %vm71, %vm81
    %v84 = vsel %vm82, %v55, -1e+30
    %v85 = vsel %vm83, %v57, -1e+30
    %vm86 = vcmask 7168
    %v87 = vsel %vm86, %v84, -inf
    %v88 = vrot.slane %v87, 4
    %v89 = vmax.f32 %v87, %v88
    %v90 = vrot.slane %v89, 2
    %v91 = vmax.f32 %v89, %v90
    %v92 = vrot.slane %v91, 1
    %v93 = vmax.f32 %v91, %v92
    %v94 = vsel %vm86, %v85, -inf
    %v95 = vrot.slane %v94, 4
    %v96 = vmax.f32 %v94, %v95
    %v97 = vrot.slane %v96, 2
    %v98 = vmax.f32 %v96, %v97
    %v99 = vrot.slane %v98, 1
    %v100 = vmax.f32 %v98, %v99
    %v101 = vsub.f32 %v84, %v93
    %v102 = vsub.f32 %v85, %v100
    %v103 = vmul.f32 %v101, 1.442695
    %v104 = vpow.pop %v103
    %v105 = vmul.f32 %v102, 1.442695
    %v106 = vpow.pop %v105
    %v107 = vsel %vm82, %v104, 0.0
    %v108 = vsel %vm83, %v106, 0.0
    %v109 = vsel %vm86, %v107, 0.0
    %v110 = vrot.slane %v109, 4
    %v111 = vadd.f32 %v109, %v110
    %v112 = vrot.slane %v111, 2
    %v113 = vadd.f32 %v111, %v112
    %v114 = vrot.slane %v113, 1
    %v115 = vadd.f32 %v113, %v114
    %v116 = vsel %vm86, %v108, 0.0
    %v117 = vrot.slane %v116, 4
    %v118 = vadd.f32 %v116, %v117
    %v119 = vrot.slane %v118, 2
    %v120 = vadd.f32 %v118, %v119
    %v121 = vrot.slane %v120, 1
    %v122 = vadd.f32 %v120, %v121
    %v123 = vmax.f32 %v115, 1e-30
    %v124 = vmax.f32 %v122, 1e-30
    %v125 = vrcp.pop %v123
    %v126 = vrcp.pop %v124
    %v127 = vmul.f32 %v123, %v125
    %v128 = vmul.f32 %v124, %v126
    %v129 = vsub.f32 2.0, %v127
    %v130 = vsub.f32 2.0, %v128
    %v131 = vmul.f32 %v125, %v129
    %v132 = vmul.f32 %v126, %v130
    %134 = vset.pattern.permute.xlu0 0
    %135 = vperm.xlu0 %134, %v107
    %v136 = vpop.permute.xlu0 %135
    %139 = vset.pattern.permute.xlu0 0
    %140 = vperm.xlu0 %139, %v108
    %v141 = vpop.permute.xlu0 %140
    %v143 = vmul.f32 %v136, %v44
    %v144 = vmul.f32 %v141, %v45
    %v145 = vrot.slane %v143, 4
    %v146 = vadd.f32 %v143, %v145
    %v147 = vrot.slane %v146, 2
    %v148 = vadd.f32 %v146, %v147
    %v149 = vrot.slane %v148, 1
    %v150 = vadd.f32 %v148, %v149
    %v151 = vrot.slane %v144, 4
    %v152 = vadd.f32 %v144, %v151
    %v153 = vrot.slane %v152, 2
    %v154 = vadd.f32 %v152, %v153
    %v155 = vrot.slane %v154, 1
    %v156 = vadd.f32 %v154, %v155
    %158 = vset.pattern.permute.xlu0 0
    %159 = vperm.xlu0 %158, %v131
    %v160 = vpop.permute.xlu0 %159
    %163 = vset.pattern.permute.xlu0 0
    %164 = vperm.xlu0 %163, %v132
    %v165 = vpop.permute.xlu0 %164
    %v167 = vmul.f32 %v150, %v160
    %v168 = vmul.f32 %v156, %v165
    %vm171 = vcmask 1041409
    %v172 = vsel %vm171, %v168, %v167
    %174 = vst [vmem:[#allocation7] sm:$0x3] %v172
    // Predicated region
    $region22: #{tpu_custom_call.1} parent=1 // pred_check
      _
    $region23: #{tpu_custom_call.1} parent=1 // pred_check_branch
      %176 = sbr.rel (0) target = $region25
    $region24: #{tpu_custom_call.1} parent=1 // pred_region
      %s178 = ssub.s32 32, 32
      %179 = vsyncadd [#allocation4], %s178
      %s181 = sshll.u32 [#allocation7], 4
      %s182 = int_to_ptr.vmem [resolvable:$true] %s181
      %184 = dma.vmem_to_hbm [thread:$0]  %s182, 32, %s3, [#allocation4]
    $region25: #{tpu_custom_call.1} parent=1 // pred_fallthru
      _
    // Predicated region
    $region26: #{tpu_custom_call.1} parent=1 // pred_check
      _
    $region27: #{tpu_custom_call.1} parent=1 // pred_check_branch
      %186 = sbr.rel (0) target = $region29
    $region28: #{tpu_custom_call.1} parent=1 // pred_region
      %187 = dma.done [#allocation4], 32
    $region29: #{tpu_custom_call.1} parent=1 // pred_fallthru
      _
    %188 = vsyncpa [#allocation3], 1
    %189 = vsyncpa [#allocation6], 1
    %190 = vsyncpa [#allocation4], 1

</llo_original>
